<compile_context>
chip_gen: v5e
topology: v5e:2x2
jax: 0.10.0
libtpu: 0.0.40
codegen_flags: <defaults>
</compile_context>

<pallas_src>
import functools

import jax
import jax.numpy as jnp
from jax.experimental import pallas as pl
from jax.experimental.pallas import tpu as pltpu

GAMMA = 2  # module default


def _partial_ce_kernel(logits_ref, tgt_ref, out_ref, *, n_valid, n_tile):
    """Per-tile partial sums of (logsumexp - target_logit), one value per task."""
    n = pl.program_id(0)

    x = logits_ref[...].astype(jnp.float32)            # (T, NT, C), upcast in-kernel
    tgt = tgt_ref[...]                                  # (T, NT, 1) int32

    # numerically stable log-sum-exp over the class (lane) axis
    m = jnp.max(x, axis=-1, keepdims=True)              # (T, NT, 1)
    lse = m + jnp.log(jnp.sum(jnp.exp(x - m), axis=-1, keepdims=True))

    # target-logit gather via one-hot masking (no dynamic gather on TPU)
    col = jax.lax.broadcasted_iota(jnp.int32, x.shape, 2)
    picked = jnp.sum(jnp.where(col == tgt, x, 0.0), axis=-1, keepdims=True)

    # mask rows that are batch padding (global row index >= true N)
    row = jax.lax.broadcasted_iota(jnp.int32, (x.shape[0], x.shape[1], 1), 1)
    valid = (n * n_tile + row) < n_valid
    contrib = jnp.where(valid, lse - picked, 0.0)        # (T, NT, 1)

    out_ref[...] = jnp.sum(contrib, axis=1)[None, :, :]  # (1, T, 1) partial sums


def _choose_batch_tile(N, T, C, itemsize, budget_bytes=3 << 20, max_tile=2048):
    """Rows per tile so one input buffer (logits + lane-padded i32 targets) fits budget."""
    per_row = T * (C * itemsize + 128 * 4)
    tile = max(8, min(max_tile, budget_bytes // per_row))
    tile = (tile // 8) * 8
    n_pad8 = ((N + 7) // 8) * 8
    return min(tile, n_pad8)


def multitask_focal(logits, targets, gamma=GAMMA, n_tile=None):
    """logits: [T, N, C] (any float dtype); targets: int [T, N].

    Returns (loss, loss_0, loss_1, loss_2), matching the PyTorch module.
    """
    T, N, C = logits.shape
    itemsize = jnp.dtype(logits.dtype).itemsize

    # clamp targets like take_along_axis (reference); PyTorch would error on OOB
    tgt = jnp.clip(targets.astype(jnp.int32), 0, C - 1)

    if n_tile is None:
        n_tile = _choose_batch_tile(N, T, C, itemsize)
    n_tile = max(8, (int(n_tile) // 8) * 8)

    num_tiles = int(pl.cdiv(N, n_tile))
    n_pad = num_tiles * n_tile
    if n_pad != N:
        logits = jnp.pad(logits, ((0, 0), (0, n_pad - N), (0, 0)))
        tgt = jnp.pad(tgt, ((0, 0), (0, n_pad - N)))
    tgt3 = tgt.reshape(T, n_pad, 1)

    kernel = functools.partial(_partial_ce_kernel, n_valid=N, n_tile=n_tile)

    bytes_accessed = int(logits.size) * itemsize + int(tgt3.size) * 4 + num_tiles * T * 4
    partials = pl.pallas_call(
        kernel,
        out_shape=jax.ShapeDtypeStruct((num_tiles, T, 1), jnp.float32),
        grid=(num_tiles,),
        in_specs=[
            pl.BlockSpec((T, n_tile, C), lambda n: (0, n, 0)),
            pl.BlockSpec((T, n_tile, 1), lambda n: (0, n, 0)),
        ],
        out_specs=pl.BlockSpec((1, T, 1), lambda n: (n, 0, 0)),
        compiler_params=pltpu.CompilerParams(
            dimension_semantics=("parallel",),
            vmem_limit_bytes=32 * 1024 * 1024,
        ),
        cost_estimate=pl.CostEstimate(
            flops=6 * T * n_pad * C,
            transcendentals=T * n_pad * (C + 1),
            bytes_accessed=bytes_accessed,
        ),
    )(logits, tgt3)

    # finish in the wrapper: mean CE per task, focal transform, total loss
    ce = partials[:, :, 0].sum(axis=0) / N               # (T,)
    pt = jnp.exp(-ce)
    per_task = (1.0 - pt) ** gamma * ce                  # (T,)
    loss = per_task[0] + per_task[1] + per_task[2]
    return loss, per_task[0], per_task[1], per_task[2]


def _reference(logits, targets, gamma=GAMMA):
    """Pure-JAX reference replicating the PyTorch module semantics."""
    losses = []
    for t in range(logits.shape[0]):
        x = logits[t].astype(jnp.float32)
        y = targets[t]
        logp = jax.nn.log_softmax(x, axis=-1)
        ce = -jnp.mean(jnp.take_along_axis(logp, y[:, None], axis=-1))
        pt = jnp.exp(-ce)
        losses.append((1.0 - pt) ** gamma * ce)
    return sum(losses), losses[0], losses[1], losses[2]


if __name__ == "__main__":
    key = jax.random.PRNGKey(0)
    k1, k2, k3, k4 = jax.random.split(key, 4)

    T, C = 3, 32

    def check(lg, tg, n_tile=None, tol=1e-5):
        got = multitask_focal(lg, tg, n_tile=n_tile)
        jax.block_until_ready(got)
        want = _reference(lg, tg)
        for g, w in zip(got, want):
            assert jnp.allclose(g, w, rtol=tol, atol=tol), (g, w)

    # 1) f32, aligned batch, auto tile size (single grid step)
    logits_a = jax.random.normal(k1, (T, 64, C), dtype=jnp.float32)
    tgt_a = jax.random.randint(k2, (T, 64), 0, C, dtype=jnp.int32)
    check(logits_a, tgt_a)

    # 2) f32, ragged batch with a forced small tile (multi-step grid + row masking)
    logits_b = jax.random.normal(k3, (T, 56, C), dtype=jnp.float32)
    tgt_b = jax.random.randint(k4, (T, 56), 0, C, dtype=jnp.int32)
    check(logits_b, tgt_b, n_tile=16)

    # 3) bf16 logits fed natively (upcast happens inside the kernel), multi-tile
    check(logits_a.astype(jnp.bfloat16), tgt_a, n_tile=16)

    print("KERNEL_OK")
</pallas_src>

<mosaic_0001>
module attributes {stable_mosaic.version = 11 : i64} {
  func.func @_partial_ce_kernel(%arg0: i32, %arg1: memref<3x64x32xf32, #tpu.memory_space<vmem>>, %arg2: memref<3x64x1xi32, #tpu.memory_space<vmem>>, %arg3: memref<1x3x1xf32, #tpu.memory_space<vmem>>) attributes {dimension_semantics = [#tpu.dimension_semantics<parallel>], iteration_bounds = array<i64: 1>, scalar_prefetch = 0 : i64, scratch_operands = 0 : i64, tpu.core_type = #tpu.core_type<tc>, window_params = [{transform_indices = @transform_0, window_bounds = array<i64: 3, 64, 32>}, {transform_indices = @transform_1, window_bounds = array<i64: 3, 64, 1>}, {transform_indices = @transform_2, window_bounds = array<i64: 1, 3, 1>}]} {
    %c0 = arith.constant 0 : index
    %c0_0 = arith.constant 0 : index
    %c0_1 = arith.constant 0 : index
    %0 = vector.load %arg1[%c0, %c0_0, %c0_1] : memref<3x64x32xf32, #tpu.memory_space<vmem>>, vector<3x64x32xf32>
    %c0_2 = arith.constant 0 : index
    %c0_3 = arith.constant 0 : index
    %c0_4 = arith.constant 0 : index
    %1 = vector.load %arg2[%c0_2, %c0_3, %c0_4] : memref<3x64x1xi32, #tpu.memory_space<vmem>>, vector<3x64x1xi32>
    %cst = arith.constant dense<0xFF800000> : vector<3x64xf32>
    %2 = vector.multi_reduction <maximumf>, %0, %cst [2] : vector<3x64x32xf32> to vector<3x64xf32>
    %3 = vector.shape_cast %2 : vector<3x64xf32> to vector<3x64x1xf32>
    %4 = vector.broadcast %3 : vector<3x64x1xf32> to vector<3x64x32xf32>
    %5 = arith.subf %0, %4 : vector<3x64x32xf32>
    %6 = math.exp %5 : vector<3x64x32xf32>
    %cst_5 = arith.constant dense<0.000000e+00> : vector<3x64xf32>
    %7 = vector.multi_reduction <add>, %6, %cst_5 [2] : vector<3x64x32xf32> to vector<3x64xf32>
    %8 = vector.shape_cast %7 : vector<3x64xf32> to vector<3x64x1xf32>
    %9 = math.log %8 : vector<3x64x1xf32>
    %10 = arith.addf %3, %9 : vector<3x64x1xf32>
    %11 = tpu.iota {dimensions = array<i32: 2>} : vector<3x64x32xi32>
    %12 = vector.broadcast %1 : vector<3x64x1xi32> to vector<3x64x32xi32>
    %13 = arith.cmpi eq, %11, %12 : vector<3x64x32xi32>
    %cst_6 = arith.constant 0.000000e+00 : f32
    %14 = vector.broadcast %cst_6 : f32 to vector<3x64x32xf32>
    %15 = arith.select %13, %0, %14 : vector<3x64x32xi1>, vector<3x64x32xf32>
    %cst_7 = arith.constant dense<0.000000e+00> : vector<3x64xf32>
    %16 = vector.multi_reduction <add>, %15, %cst_7 [2] : vector<3x64x32xf32> to vector<3x64xf32>
    %17 = vector.shape_cast %16 : vector<3x64xf32> to vector<3x64x1xf32>
    %18 = tpu.iota {dimensions = array<i32: 1>} : vector<3x64x1xi32>
    %c64_i32 = arith.constant 64 : i32
    %19 = arith.muli %arg0, %c64_i32 : i32
    %20 = vector.broadcast %19 : i32 to vector<3x64x1xi32>
    %21 = arith.addi %20, %18 : vector<3x64x1xi32>
    %c64_i32_8 = arith.constant 64 : i32
    %22 = vector.broadcast %c64_i32_8 : i32 to vector<3x64x1xi32>
    %23 = arith.cmpi slt, %21, %22 : vector<3x64x1xi32>
    %24 = arith.subf %10, %17 : vector<3x64x1xf32>
    %cst_9 = arith.constant 0.000000e+00 : f32
    %25 = vector.broadcast %cst_9 : f32 to vector<3x64x1xf32>
    %26 = arith.select %23, %24, %25 : vector<3x64x1xi1>, vector<3x64x1xf32>
    %cst_10 = arith.constant dense<0.000000e+00> : vector<3x1xf32>
    %27 = vector.multi_reduction <add>, %26, %cst_10 [1] : vector<3x64x1xf32> to vector<3x1xf32>
    %28 = vector.shape_cast %27 : vector<3x1xf32> to vector<1x3x1xf32>
    %c0_11 = arith.constant 0 : index
    %c0_12 = arith.constant 0 : index
    %c0_13 = arith.constant 0 : index
    %29 = vector.load %arg3[%c0_11, %c0_12, %c0_13] : memref<1x3x1xf32, #tpu.memory_space<vmem>>, vector<1x3x1xf32>
    tpu.vector_store %arg3[%c0_11, %c0_12, %c0_13], %28 {strides = array<i32>} : memref<1x3x1xf32, #tpu.memory_space<vmem>>, vector<1x3x1xf32>,
    return
  }
  func.func @transform_0(%arg0: i32) -> (i32, i32, i32) {
    %c0_i32 = arith.constant 0 : i32
    %c0_i32_0 = arith.constant 0 : i32
    %c0_i32_1 = arith.constant 0 : i32
    return %c0_i32, %arg0, %c0_i32_0 : i32, i32, i32
  }
  func.func @transform_1(%arg0: i32) -> (i32, i32, i32) {
    %c0_i32 = arith.constant 0 : i32
    %c0_i32_0 = arith.constant 0 : i32
    %c0_i32_1 = arith.constant 0 : i32
    return %c0_i32, %arg0, %c0_i32_0 : i32, i32, i32
  }
  func.func @transform_2(%arg0: i32) -> (i32, i32, i32) {
    %c0_i32 = arith.constant 0 : i32
    %c0_i32_0 = arith.constant 0 : i32
    %c0_i32_1 = arith.constant 0 : i32
    return %arg0, %c0_i32, %c0_i32_0 : i32, i32, i32
  }
}

</mosaic_0001>

<llo_original>
// kernel: tpu_custom_call.1
$region0: #{tpu_custom_call.1}
  #allocation0 [shape = 'u32[]', space=smem, size = 0x4, offset = 0x4, fixed_abs, tag = 'smem constant byte address 0x4 - core index']
  #allocation1 [shape = 'u32[72,128]{1,0:T(1,128)}', space=vmem, size = 0x9000, scoped, tag = 'internal scratch']
  %s0 = inlined_call_operand.vmem [shape: f32[3,64,32], index: 0, kind: input, shape index: {}]
  %s1 = inlined_call_operand.vmem [shape: s32[3,64,1], index: 1, kind: input, shape index: {}]
  %s2 = inlined_call_operand.vmem [shape: f32[1,3,1], index: 2, kind: output, shape index: {}]
  %s3 = sld [smem:[#allocation0]]
  $region18: #{tpu_custom_call.1} parent=0
    _
  %s5 = ssub.s32 1, %s3
  %s6 = scalar_select 0, %s5, %s3
  // Predicated region
  $region2: #{tpu_custom_call.1} parent=0 // pred_check
    _
  $region3: #{tpu_custom_call.1} parent=0 // pred_check_branch
    %8 = sbr.rel (0) target = $region5
  $region4: #{tpu_custom_call.1} parent=0 // pred_region
    _
  $region5: #{tpu_custom_call.1} parent=0 // pred_fallthru
    _
  // Predicated region
  $region6: #{tpu_custom_call.1} parent=0 // pred_check
    _
  $region7: #{tpu_custom_call.1} parent=0 // pred_check_branch
    %10 = sbr.rel (0) target = $region9
  $region8: #{tpu_custom_call.1} parent=0 // pred_region
    _
  $region9: #{tpu_custom_call.1} parent=0 // pred_fallthru
    _
  %v11 = vld [vmem:[%s0] sm:$0xff]
  %v12 = vld [vmem:[%s0 + $0x8] sm:$0xff]
  %v13 = vld [vmem:[%s0 + $0x10] sm:$0xff]
  %v14 = vld [vmem:[%s0 + $0x18] sm:$0xff]
  %v15 = vld [vmem:[%s0 + $0x20] sm:$0xff]
  %v16 = vld [vmem:[%s0 + $0x28] sm:$0xff]
  %v17 = vld [vmem:[%s0 + $0x30] sm:$0xff]
  %v18 = vld [vmem:[%s0 + $0x38] sm:$0xff]
  %v19 = vld [vmem:[%s0 + $0x40] sm:$0xff]
  %v20 = vld [vmem:[%s0 + $0x48] sm:$0xff]
  %v21 = vld [vmem:[%s0 + $0x50] sm:$0xff]
  %v22 = vld [vmem:[%s0 + $0x58] sm:$0xff]
  %v23 = vld [vmem:[%s0 + $0x60] sm:$0xff]
  %v24 = vld [vmem:[%s0 + $0x68] sm:$0xff]
  %v25 = vld [vmem:[%s0 + $0x70] sm:$0xff]
  %v26 = vld [vmem:[%s0 + $0x78] sm:$0xff]
  %v27 = vld [vmem:[%s0 + $0x80] sm:$0xff]
  %v28 = vld [vmem:[%s0 + $0x88] sm:$0xff]
  %v29 = vld [vmem:[%s0 + $0x90] sm:$0xff]
  %v30 = vld [vmem:[%s0 + $0x98] sm:$0xff]
  %v31 = vld [vmem:[%s0 + $0xa0] sm:$0xff]
  %v32 = vld [vmem:[%s0 + $0xa8] sm:$0xff]
  %v33 = vld [vmem:[%s0 + $0xb0] sm:$0xff]
  %v34 = vld [vmem:[%s0 + $0xb8] sm:$0xff]
  %v35 = vld [vmem:[%s1] sm:$0xff]
  %v36 = vld [vmem:[%s1 + $0x8] sm:$0xff]
  %v37 = vld [vmem:[%s1 + $0x10] sm:$0xff]
  %v38 = vld [vmem:[%s1 + $0x18] sm:$0xff]
  %v39 = vld [vmem:[%s1 + $0x20] sm:$0xff]
  %v40 = vld [vmem:[%s1 + $0x28] sm:$0xff]
  %v41 = vld [vmem:[%s1 + $0x30] sm:$0xff]
  %v42 = vld [vmem:[%s1 + $0x38] sm:$0xff]
  %v43 = vld [vmem:[%s1 + $0x40] sm:$0xff]
  %v44 = vld [vmem:[%s1 + $0x48] sm:$0xff]
  %v45 = vld [vmem:[%s1 + $0x50] sm:$0xff]
  %v46 = vld [vmem:[%s1 + $0x58] sm:$0xff]
  %v47 = vld [vmem:[%s1 + $0x60] sm:$0xff]
  %v48 = vld [vmem:[%s1 + $0x68] sm:$0xff]
  %v49 = vld [vmem:[%s1 + $0x70] sm:$0xff]
  %v50 = vld [vmem:[%s1 + $0x78] sm:$0xff]
  %v51 = vld [vmem:[%s1 + $0x80] sm:$0xff]
  %v52 = vld [vmem:[%s1 + $0x88] sm:$0xff]
  %v53 = vld [vmem:[%s1 + $0x90] sm:$0xff]
  %v54 = vld [vmem:[%s1 + $0x98] sm:$0xff]
  %v55 = vld [vmem:[%s1 + $0xa0] sm:$0xff]
  %v56 = vld [vmem:[%s1 + $0xa8] sm:$0xff]
  %v57 = vld [vmem:[%s1 + $0xb0] sm:$0xff]
  %v58 = vld [vmem:[%s1 + $0xb8] sm:$0xff]
  %vm59 = vcmask 261120
  %v60 = vsel %vm59, %v11, -inf
  %61 = vmax.xlane.f32.xlu0 %v60
  %v62 = vpop.xlane.xlu0 %61
  %v63 = vsel %vm59, %v12, -inf
  %64 = vmax.xlane.f32.xlu0 %v63
  %v65 = vpop.xlane.xlu0 %64
  %v66 = vsel %vm59, %v13, -inf
  %67 = vmax.xlane.f32.xlu0 %v66
  %v68 = vpop.xlane.xlu0 %67
  %v69 = vsel %vm59, %v14, -inf
  %70 = vmax.xlane.f32.xlu0 %v69
  %v71 = vpop.xlane.xlu0 %70
  %v72 = vsel %vm59, %v15, -inf
  %73 = vmax.xlane.f32.xlu0 %v72
  %v74 = vpop.xlane.xlu0 %73
  %v75 = vsel %vm59, %v16, -inf
  %76 = vmax.xlane.f32.xlu0 %v75
  %v77 = vpop.xlane.xlu0 %76
  %v78 = vsel %vm59, %v17, -inf
  %79 = vmax.xlane.f32.xlu0 %v78
  %v80 = vpop.xlane.xlu0 %79
  %v81 = vsel %vm59, %v18, -inf
  %82 = vmax.xlane.f32.xlu0 %v81
  %v83 = vpop.xlane.xlu0 %82
  %v84 = vsel %vm59, %v19, -inf
  %85 = vmax.xlane.f32.xlu0 %v84
  %v86 = vpop.xlane.xlu0 %85
  %v87 = vsel %vm59, %v20, -inf
  %88 = vmax.xlane.f32.xlu0 %v87
  %v89 = vpop.xlane.xlu0 %88
  %v90 = vsel %vm59, %v21, -inf
  %91 = vmax.xlane.f32.xlu0 %v90
  %v92 = vpop.xlane.xlu0 %91
  %v93 = vsel %vm59, %v22, -inf
  %94 = vmax.xlane.f32.xlu0 %v93
  %v95 = vpop.xlane.xlu0 %94
  %v96 = vsel %vm59, %v23, -inf
  %97 = vmax.xlane.f32.xlu0 %v96
  %v98 = vpop.xlane.xlu0 %97
  %v99 = vsel %vm59, %v24, -inf
  %100 = vmax.xlane.f32.xlu0 %v99
  %v101 = vpop.xlane.xlu0 %100
  %v102 = vsel %vm59, %v25, -inf
  %103 = vmax.xlane.f32.xlu0 %v102
  %v104 = vpop.xlane.xlu0 %103
  %v105 = vsel %vm59, %v26, -inf
  %106 = vmax.xlane.f32.xlu0 %v105
  %v107 = vpop.xlane.xlu0 %106
  %v108 = vsel %vm59, %v27, -inf
  %109 = vmax.xlane.f32.xlu0 %v108
  %v110 = vpop.xlane.xlu0 %109
  %v111 = vsel %vm59, %v28, -inf
  %112 = vmax.xlane.f32.xlu0 %v111
  %v113 = vpop.xlane.xlu0 %112
  %v114 = vsel %vm59, %v29, -inf
  %115 = vmax.xlane.f32.xlu0 %v114
  %v116 = vpop.xlane.xlu0 %115
  %v117 = vsel %vm59, %v30, -inf
  %118 = vmax.xlane.f32.xlu0 %v117
  %v119 = vpop.xlane.xlu0 %118
  %v120 = vsel %vm59, %v31, -inf
  %121 = vmax.xlane.f32.xlu0 %v120
  %v122 = vpop.xlane.xlu0 %121
  %v123 = vsel %vm59, %v32, -inf
  %124 = vmax.xlane.f32.xlu0 %v123
  %v125 = vpop.xlane.xlu0 %124
  %v126 = vsel %vm59, %v33, -inf
  %127 = vmax.xlane.f32.xlu0 %v126
  %v128 = vpop.xlane.xlu0 %127
  %v129 = vsel %vm59, %v34, -inf
  %130 = vmax.xlane.f32.xlu0 %v129
  %v131 = vpop.xlane.xlu0 %130
  %v132 = vsub.f32 %v11, %v62
  %v133 = vsub.f32 %v12, %v65
  %v134 = vsub.f32 %v13, %v68
  %v135 = vsub.f32 %v14, %v71
  %v136 = vsub.f32 %v15, %v74
  %v137 = vsub.f32 %v16, %v77
  %v138 = vsub.f32 %v17, %v80
  %v139 = vsub.f32 %v18, %v83
  %v140 = vsub.f32 %v19, %v86
  %v141 = vsub.f32 %v20, %v89
  %v142 = vsub.f32 %v21, %v92
  %v143 = vsub.f32 %v22, %v95
  %v144 = vsub.f32 %v23, %v98
  %v145 = vsub.f32 %v24, %v101
  %v146 = vsub.f32 %v25, %v104
  %v147 = vsub.f32 %v26, %v107
  %v148 = vsub.f32 %v27, %v110
  %v149 = vsub.f32 %v28, %v113
  %v150 = vsub.f32 %v29, %v116
  %v151 = vsub.f32 %v30, %v119
  %v152 = vsub.f32 %v31, %v122
  %v153 = vsub.f32 %v32, %v125
  %v154 = vsub.f32 %v33, %v128
  %v155 = vsub.f32 %v34, %v131
  %v156 = vmul.f32 %v132, 1.442695
  %v157 = vpow.pop %v156
  %v158 = vmul.f32 %v133, 1.442695
  %v159 = vpow.pop %v158
  %v160 = vmul.f32 %v134, 1.442695
  %v161 = vpow.pop %v160
  %v162 = vmul.f32 %v135, 1.442695
  %v163 = vpow.pop %v162
  %v164 = vmul.f32 %v136, 1.442695
  %v165 = vpow.pop %v164
  %v166 = vmul.f32 %v137, 1.442695
  %v167 = vpow.pop %v166
  %v168 = vmul.f32 %v138, 1.442695
  %v169 = vpow.pop %v168
  %v170 = vmul.f32 %v139, 1.442695
  %v171 = vpow.pop %v170
  %v172 = vmul.f32 %v140, 1.442695
  %v173 = vpow.pop %v172
  %v174 = vmul.f32 %v141, 1.442695
  %v175 = vpow.pop %v174
  %v176 = vmul.f32 %v142, 1.442695
  %v177 = vpow.pop %v176
  %v178 = vmul.f32 %v143, 1.442695
  %v179 = vpow.pop %v178
  %v180 = vmul.f32 %v144, 1.442695
  %v181 = vpow.pop %v180
  %v182 = vmul.f32 %v145, 1.442695
  %v183 = vpow.pop %v182
  %v184 = vmul.f32 %v146, 1.442695
  %v185 = vpow.pop %v184
  %v186 = vmul.f32 %v147, 1.442695
  %v187 = vpow.pop %v186
  %v188 = vmul.f32 %v148, 1.442695
  %v189 = vpow.pop %v188
  %v190 = vmul.f32 %v149, 1.442695
  %v191 = vpow.pop %v190
  %v192 = vmul.f32 %v150, 1.442695
  %v193 = vpow.pop %v192
  %v194 = vmul.f32 %v151, 1.442695
  %v195 = vpow.pop %v194
  %v196 = vmul.f32 %v152, 1.442695
  %v197 = vpow.pop %v196
  %v198 = vmul.f32 %v153, 1.442695
  %v199 = vpow.pop %v198
  %v200 = vmul.f32 %v154, 1.442695
  %v201 = vpow.pop %v200
  %v202 = vmul.f32 %v155, 1.442695
  %v203 = vpow.pop %v202
  %v204 = vsel %vm59, %v157, 0.0
  %205 = vadd.xlane.f32.xlu0 %v204
  %v206 = vpop.xlane.xlu0 %205
  %v207 = vsel %vm59, %v159, 0.0
  %208 = vadd.xlane.f32.xlu0 %v207
  %v209 = vpop.xlane.xlu0 %208
  %v210 = vsel %vm59, %v161, 0.0
  %211 = vadd.xlane.f32.xlu0 %v210
  %v212 = vpop.xlane.xlu0 %211
  %v213 = vsel %vm59, %v163, 0.0
  %214 = vadd.xlane.f32.xlu0 %v213
  %v215 = vpop.xlane.xlu0 %214
  %v216 = vsel %vm59, %v165, 0.0
  %217 = vadd.xlane.f32.xlu0 %v216
  %v218 = vpop.xlane.xlu0 %217
  %v219 = vsel %vm59, %v167, 0.0
  %220 = vadd.xlane.f32.xlu0 %v219
  %v221 = vpop.xlane.xlu0 %220
  %v222 = vsel %vm59, %v169, 0.0
  %223 = vadd.xlane.f32.xlu0 %v222
  %v224 = vpop.xlane.xlu0 %223
  %v225 = vsel %vm59, %v171, 0.0
  %226 = vadd.xlane.f32.xlu0 %v225
  %v227 = vpop.xlane.xlu0 %226
  %v228 = vsel %vm59, %v173, 0.0
  %229 = vadd.xlane.f32.xlu0 %v228
  %v230 = vpop.xlane.xlu0 %229
  %v231 = vsel %vm59, %v175, 0.0
  %232 = vadd.xlane.f32.xlu0 %v231
  %v233 = vpop.xlane.xlu0 %232
  %v234 = vsel %vm59, %v177, 0.0
  %235 = vadd.xlane.f32.xlu0 %v234
  %v236 = vpop.xlane.xlu0 %235
  %v237 = vsel %vm59, %v179, 0.0
  %238 = vadd.xlane.f32.xlu0 %v237
  %v239 = vpop.xlane.xlu0 %238
  %v240 = vsel %vm59, %v181, 0.0
  %241 = vadd.xlane.f32.xlu0 %v240
  %v242 = vpop.xlane.xlu0 %241
  %v243 = vsel %vm59, %v183, 0.0
  %244 = vadd.xlane.f32.xlu0 %v243
  %v245 = vpop.xlane.xlu0 %244
  %v246 = vsel %vm59, %v185, 0.0
  %247 = vadd.xlane.f32.xlu0 %v246
  %v248 = vpop.xlane.xlu0 %247
  %v249 = vsel %vm59, %v187, 0.0
  %250 = vadd.xlane.f32.xlu0 %v249
  %v251 = vpop.xlane.xlu0 %250
  %v252 = vsel %vm59, %v189, 0.0
  %253 = vadd.xlane.f32.xlu0 %v252
  %v254 = vpop.xlane.xlu0 %253
  %v255 = vsel %vm59, %v191, 0.0
  %256 = vadd.xlane.f32.xlu0 %v255
  %v257 = vpop.xlane.xlu0 %256
  %v258 = vsel %vm59, %v193, 0.0
  %259 = vadd.xlane.f32.xlu0 %v258
  %v260 = vpop.xlane.xlu0 %259
  %v261 = vsel %vm59, %v195, 0.0
  %262 = vadd.xlane.f32.xlu0 %v261
  %v263 = vpop.xlane.xlu0 %262
  %v264 = vsel %vm59, %v197, 0.0
  %265 = vadd.xlane.f32.xlu0 %v264
  %v266 = vpop.xlane.xlu0 %265
  %v267 = vsel %vm59, %v199, 0.0
  %268 = vadd.xlane.f32.xlu0 %v267
  %v269 = vpop.xlane.xlu0 %268
  %v270 = vsel %vm59, %v201, 0.0
  %271 = vadd.xlane.f32.xlu0 %v270
  %v272 = vpop.xlane.xlu0 %271
  %v273 = vsel %vm59, %v203, 0.0
  %274 = vadd.xlane.f32.xlu0 %v273
  %v275 = vpop.xlane.xlu0 %274
  %v276 = vlog2.pop %v206
  %v277 = vmul.f32 %v276, 0.6931472
  %v278 = vlog2.pop %v209
  %v279 = vmul.f32 %v278, 0.6931472
  %v280 = vlog2.pop %v212
  %v281 = vmul.f32 %v280, 0.6931472
  %v282 = vlog2.pop %v215
  %v283 = vmul.f32 %v282, 0.6931472
  %v284 = vlog2.pop %v218
  %v285 = vmul.f32 %v284, 0.6931472
  %v286 = vlog2.pop %v221
  %v287 = vmul.f32 %v286, 0.6931472
  %v288 = vlog2.pop %v224
  %v289 = vmul.f32 %v288, 0.6931472
  %v290 = vlog2.pop %v227
  %v291 = vmul.f32 %v290, 0.6931472
  %v292 = vlog2.pop %v230
  %v293 = vmul.f32 %v292, 0.6931472
  %v294 = vlog2.pop %v233
  %v295 = vmul.f32 %v294, 0.6931472
  %v296 = vlog2.pop %v236
  %v297 = vmul.f32 %v296, 0.6931472
  %v298 = vlog2.pop %v239
  %v299 = vmul.f32 %v298, 0.6931472
  %v300 = vlog2.pop %v242
  %v301 = vmul.f32 %v300, 0.6931472
  %v302 = vlog2.pop %v245
  %v303 = vmul.f32 %v302, 0.6931472
  %v304 = vlog2.pop %v248
  %v305 = vmul.f32 %v304, 0.6931472
  %v306 = vlog2.pop %v251
  %v307 = vmul.f32 %v306, 0.6931472
  %v308 = vlog2.pop %v254
  %v309 = vmul.f32 %v308, 0.6931472
  %v310 = vlog2.pop %v257
  %v311 = vmul.f32 %v310, 0.6931472
  %v312 = vlog2.pop %v260
  %v313 = vmul.f32 %v312, 0.6931472
  %v314 = vlog2.pop %v263
  %v315 = vmul.f32 %v314, 0.6931472
  %v316 = vlog2.pop %v266
  %v317 = vmul.f32 %v316, 0.6931472
  %v318 = vlog2.pop %v269
  %v319 = vmul.f32 %v318, 0.6931472
  %v320 = vlog2.pop %v272
  %v321 = vmul.f32 %v320, 0.6931472
  %v322 = vlog2.pop %v275
  %v323 = vmul.f32 %v322, 0.6931472
  %v324 = vadd.f32 %v62, %v277
  %v325 = vadd.f32 %v65, %v279
  %v326 = vadd.f32 %v68, %v281
  %v327 = vadd.f32 %v71, %v283
  %v328 = vadd.f32 %v74, %v285
  %v329 = vadd.f32 %v77, %v287
  %v330 = vadd.f32 %v80, %v289
  %v331 = vadd.f32 %v83, %v291
  %v332 = vadd.f32 %v86, %v293
  %v333 = vadd.f32 %v89, %v295
  %v334 = vadd.f32 %v92, %v297
  %v335 = vadd.f32 %v95, %v299
  %v336 = vadd.f32 %v98, %v301
  %v337 = vadd.f32 %v101, %v303
  %v338 = vadd.f32 %v104, %v305
  %v339 = vadd.f32 %v107, %v307
  %v340 = vadd.f32 %v110, %v309
  %v341 = vadd.f32 %v113, %v311
  %v342 = vadd.f32 %v116, %v313
  %v343 = vadd.f32 %v119, %v315
  %v344 = vadd.f32 %v122, %v317
  %v345 = vadd.f32 %v125, %v319
  %v346 = vadd.f32 %v128, %v321
  %v347 = vadd.f32 %v131, %v323
  %v348 = vlaneseq
  %v349 = vand.u32 %v348, 127
  %350 = vset.pattern.permute.xlu0 0
  %351 = vperm.xlu0 %350, %v35
  %v352 = vpop.permute.xlu0 %351
  %353 = vset.pattern.permute.xlu0 0
  %354 = vperm.xlu0 %353, %v36
  %v355 = vpop.permute.xlu0 %354
  %356 = vset.pattern.permute.xlu0 0
  %357 = vperm.xlu0 %356, %v37
  %v358 = vpop.permute.xlu0 %357
  %359 = vset.pattern.permute.xlu0 0
  %360 = vperm.xlu0 %359, %v38
  %v361 = vpop.permute.xlu0 %360
  %362 = vset.pattern.permute.xlu0 0
  %363 = vperm.xlu0 %362, %v39
  %v364 = vpop.permute.xlu0 %363
  %365 = vset.pattern.permute.xlu0 0
  %366 = vperm.xlu0 %365, %v40
  %v367 = vpop.permute.xlu0 %366
  %368 = vset.pattern.permute.xlu0 0
  %369 = vperm.xlu0 %368, %v41
  %v370 = vpop.permute.xlu0 %369
  %371 = vset.pattern.permute.xlu0 0
  %372 = vperm.xlu0 %371, %v42
  %v373 = vpop.permute.xlu0 %372
  %374 = vset.pattern.permute.xlu0 0
  %375 = vperm.xlu0 %374, %v43
  %v376 = vpop.permute.xlu0 %375
  %377 = vset.pattern.permute.xlu0 0
  %378 = vperm.xlu0 %377, %v44
  %v379 = vpop.permute.xlu0 %378
  %380 = vset.pattern.permute.xlu0 0
  %381 = vperm.xlu0 %380, %v45
  %v382 = vpop.permute.xlu0 %381
  %383 = vset.pattern.permute.xlu0 0
  %384 = vperm.xlu0 %383, %v46
  %v385 = vpop.permute.xlu0 %384
  %386 = vset.pattern.permute.xlu0 0
  %387 = vperm.xlu0 %386, %v47
  %v388 = vpop.permute.xlu0 %387
  %389 = vset.pattern.permute.xlu0 0
  %390 = vperm.xlu0 %389, %v48
  %v391 = vpop.permute.xlu0 %390
  %392 = vset.pattern.permute.xlu0 0
  %393 = vperm.xlu0 %392, %v49
  %v394 = vpop.permute.xlu0 %393
  %395 = vset.pattern.permute.xlu0 0
  %396 = vperm.xlu0 %395, %v50
  %v397 = vpop.permute.xlu0 %396
  %398 = vset.pattern.permute.xlu0 0
  %399 = vperm.xlu0 %398, %v51
  %v400 = vpop.permute.xlu0 %399
  %401 = vset.pattern.permute.xlu0 0
  %402 = vperm.xlu0 %401, %v52
  %v403 = vpop.permute.xlu0 %402
  %404 = vset.pattern.permute.xlu0 0
  %405 = vperm.xlu0 %404, %v53
  %v406 = vpop.permute.xlu0 %405
  %407 = vset.pattern.permute.xlu0 0
  %408 = vperm.xlu0 %407, %v54
  %v409 = vpop.permute.xlu0 %408
  %410 = vset.pattern.permute.xlu0 0
  %411 = vperm.xlu0 %410, %v55
  %v412 = vpop.permute.xlu0 %411
  %413 = vset.pattern.permute.xlu0 0
  %414 = vperm.xlu0 %413, %v56
  %v415 = vpop.permute.xlu0 %414
  %416 = vset.pattern.permute.xlu0 0
  %417 = vperm.xlu0 %416, %v57
  %v418 = vpop.permute.xlu0 %417
  %419 = vset.pattern.permute.xlu0 0
  %420 = vperm.xlu0 %419, %v58
  %v421 = vpop.permute.xlu0 %420
  %vm422 = vcmp.eq.s32.totalorder %v349, %v352
  %vm423 = vcmp.eq.s32.totalorder %v349, %v355
  %vm424 = vcmp.eq.s32.totalorder %v349, %v358
  %vm425 = vcmp.eq.s32.totalorder %v349, %v361
  %vm426 = vcmp.eq.s32.totalorder %v349, %v364
  %vm427 = vcmp.eq.s32.totalorder %v349, %v367
  %vm428 = vcmp.eq.s32.totalorder %v349, %v370
  %vm429 = vcmp.eq.s32.totalorder %v349, %v373
  %vm430 = vcmp.eq.s32.totalorder %v349, %v376
  %vm431 = vcmp.eq.s32.totalorder %v349, %v379
  %vm432 = vcmp.eq.s32.totalorder %v349, %v382
  %vm433 = vcmp.eq.s32.totalorder %v349, %v385
  %vm434 = vcmp.eq.s32.totalorder %v349, %v388
  %vm435 = vcmp.eq.s32.totalorder %v349, %v391
  %vm436 = vcmp.eq.s32.totalorder %v349, %v394
  %vm437 = vcmp.eq.s32.totalorder %v349, %v397
  %vm438 = vcmp.eq.s32.totalorder %v349, %v400
  %vm439 = vcmp.eq.s32.totalorder %v349, %v403
  %vm440 = vcmp.eq.s32.totalorder %v349, %v406
  %vm441 = vcmp.eq.s32.totalorder %v349, %v409
  %vm442 = vcmp.eq.s32.totalorder %v349, %v412
  %vm443 = vcmp.eq.s32.totalorder %v349, %v415
  %vm444 = vcmp.eq.s32.totalorder %v349, %v418
  %vm445 = vcmp.eq.s32.totalorder %v349, %v421
  %v446 = vsel %vm422, %v11, 0.0
  %v447 = vsel %vm423, %v12, 0.0
  %v448 = vsel %vm424, %v13, 0.0
  %v449 = vsel %vm425, %v14, 0.0
  %v450 = vsel %vm426, %v15, 0.0
  %v451 = vsel %vm427, %v16, 0.0
  %v452 = vsel %vm428, %v17, 0.0
  %v453 = vsel %vm429, %v18, 0.0
  %v454 = vsel %vm430, %v19, 0.0
  %v455 = vsel %vm431, %v20, 0.0
  %v456 = vsel %vm432, %v21, 0.0
  %v457 = vsel %vm433, %v22, 0.0
  %v458 = vsel %vm434, %v23, 0.0
  %v459 = vsel %vm435, %v24, 0.0
  %v460 = vsel %vm436, %v25, 0.0
  %v461 = vsel %vm437, %v26, 0.0
  %v462 = vsel %vm438, %v27, 0.0
  %v463 = vsel %vm439, %v28, 0.0
  %v464 = vsel %vm440, %v29, 0.0
  %v465 = vsel %vm441, %v30, 0.0
  %v466 = vsel %vm442, %v31, 0.0
  %v467 = vsel %vm443, %v32, 0.0
  %v468 = vsel %vm444, %v33, 0.0
  %v469 = vsel %vm445, %v34, 0.0
  %v470 = vsel %vm59, %v446, 0.0
  %471 = vadd.xlane.f32.xlu0 %v470
  %v472 = vpop.xlane.xlu0 %471
  %v473 = vsel %vm59, %v447, 0.0
  %474 = vadd.xlane.f32.xlu0 %v473
  %v475 = vpop.xlane.xlu0 %474
  %v476 = vsel %vm59, %v448, 0.0
  %477 = vadd.xlane.f32.xlu0 %v476
  %v478 = vpop.xlane.xlu0 %477
  %v479 = vsel %vm59, %v449, 0.0
  %480 = vadd.xlane.f32.xlu0 %v479
  %v481 = vpop.xlane.xlu0 %480
  %v482 = vsel %vm59, %v450, 0.0
  %483 = vadd.xlane.f32.xlu0 %v482
  %v484 = vpop.xlane.xlu0 %483
  %v485 = vsel %vm59, %v451, 0.0
  %486 = vadd.xlane.f32.xlu0 %v485
  %v487 = vpop.xlane.xlu0 %486
  %v488 = vsel %vm59, %v452, 0.0
  %489 = vadd.xlane.f32.xlu0 %v488
  %v490 = vpop.xlane.xlu0 %489
  %v491 = vsel %vm59, %v453, 0.0
  %492 = vadd.xlane.f32.xlu0 %v491
  %v493 = vpop.xlane.xlu0 %492
  %v494 = vsel %vm59, %v454, 0.0
  %495 = vadd.xlane.f32.xlu0 %v494
  %v496 = vpop.xlane.xlu0 %495
  %v497 = vsel %vm59, %v455, 0.0
  %498 = vadd.xlane.f32.xlu0 %v497
  %v499 = vpop.xlane.xlu0 %498
  %v500 = vsel %vm59, %v456, 0.0
  %501 = vadd.xlane.f32.xlu0 %v500
  %v502 = vpop.xlane.xlu0 %501
  %v503 = vsel %vm59, %v457, 0.0
  %504 = vadd.xlane.f32.xlu0 %v503
  %v505 = vpop.xlane.xlu0 %504
  %v506 = vsel %vm59, %v458, 0.0
  %507 = vadd.xlane.f32.xlu0 %v506
  %v508 = vpop.xlane.xlu0 %507
  %v509 = vsel %vm59, %v459, 0.0
  %510 = vadd.xlane.f32.xlu0 %v509
  %v511 = vpop.xlane.xlu0 %510
  %v512 = vsel %vm59, %v460, 0.0
  %513 = vadd.xlane.f32.xlu0 %v512
  %v514 = vpop.xlane.xlu0 %513
  %v515 = vsel %vm59, %v461, 0.0
  %516 = vadd.xlane.f32.xlu0 %v515
  %v517 = vpop.xlane.xlu0 %516
  %v518 = vsel %vm59, %v462, 0.0
  %519 = vadd.xlane.f32.xlu0 %v518
  %v520 = vpop.xlane.xlu0 %519
  %v521 = vsel %vm59, %v463, 0.0
  %522 = vadd.xlane.f32.xlu0 %v521
  %v523 = vpop.xlane.xlu0 %522
  %v524 = vsel %vm59, %v464, 0.0
  %525 = vadd.xlane.f32.xlu0 %v524
  %v526 = vpop.xlane.xlu0 %525
  %v527 = vsel %vm59, %v465, 0.0
  %528 = vadd.xlane.f32.xlu0 %v527
  %v529 = vpop.xlane.xlu0 %528
  %v530 = vsel %vm59, %v466, 0.0
  %531 = vadd.xlane.f32.xlu0 %v530
  %v532 = vpop.xlane.xlu0 %531
  %v533 = vsel %vm59, %v467, 0.0
  %534 = vadd.xlane.f32.xlu0 %v533
  %v535 = vpop.xlane.xlu0 %534
  %v536 = vsel %vm59, %v468, 0.0
  %537 = vadd.xlane.f32.xlu0 %v536
  %v538 = vpop.xlane.xlu0 %537
  %v539 = vsel %vm59, %v469, 0.0
  %540 = vadd.xlane.f32.xlu0 %v539
  %v541 = vpop.xlane.xlu0 %540
  %v542 = vlaneseq
  %v543 = vshrl.u32 %v542, 7
  %v544 = vadd.s32 %v543, 8
  %v545 = vadd.s32 %v543, 16
  %v546 = vadd.s32 %v543, 24
  %v547 = vadd.s32 %v543, 32
  %v548 = vadd.s32 %v543, 40
  %v549 = vadd.s32 %v543, 48
  %v550 = vadd.s32 %v543, 56
  %s551 = smul.u32 0, 64
  %v552 = vstv %s551
  %v553 = vadd.s32 %v552, %v543
  %v554 = vadd.s32 %v552, %v544
  %v555 = vadd.s32 %v552, %v545
  %v556 = vadd.s32 %v552, %v546
  %v557 = vadd.s32 %v552, %v547
  %v558 = vadd.s32 %v552, %v548
  %v559 = vadd.s32 %v552, %v549
  %v560 = vadd.s32 %v552, %v550
  %vm561 = vcmp.lt.s32.totalorder %v553, 64
  %vm562 = vcmp.lt.s32.totalorder %v554, 64
  %vm563 = vcmp.lt.s32.totalorder %v555, 64
  %vm564 = vcmp.lt.s32.totalorder %v556, 64
  %vm565 = vcmp.lt.s32.totalorder %v557, 64
  %vm566 = vcmp.lt.s32.totalorder %v558, 64
  %vm567 = vcmp.lt.s32.totalorder %v559, 64
  %vm568 = vcmp.lt.s32.totalorder %v560, 64
  %v569 = vsub.f32 %v324, %v472
  %v570 = vsub.f32 %v325, %v475
  %v571 = vsub.f32 %v326, %v478
  %v572 = vsub.f32 %v327, %v481
  %v573 = vsub.f32 %v328, %v484
  %v574 = vsub.f32 %v329, %v487
  %v575 = vsub.f32 %v330, %v490
  %v576 = vsub.f32 %v331, %v493
  %v577 = vsub.f32 %v332, %v496
  %v578 = vsub.f32 %v333, %v499
  %v579 = vsub.f32 %v334, %v502
  %v580 = vsub.f32 %v335, %v505
  %v581 = vsub.f32 %v336, %v508
  %v582 = vsub.f32 %v337, %v511
  %v583 = vsub.f32 %v338, %v514
  %v584 = vsub.f32 %v339, %v517
  %v585 = vsub.f32 %v340, %v520
  %v586 = vsub.f32 %v341, %v523
  %v587 = vsub.f32 %v342, %v526
  %v588 = vsub.f32 %v343, %v529
  %v589 = vsub.f32 %v344, %v532
  %v590 = vsub.f32 %v345, %v535
  %v591 = vsub.f32 %v346, %v538
  %v592 = vsub.f32 %v347, %v541
  %v593 = vsel %vm561, %v569, 0.0
  %v594 = vsel %vm562, %v570, 0.0
  %v595 = vsel %vm563, %v571, 0.0
  %v596 = vsel %vm564, %v572, 0.0
  %v597 = vsel %vm565, %v573, 0.0
  %v598 = vsel %vm566, %v574, 0.0
  %v599 = vsel %vm567, %v575, 0.0
  %v600 = vsel %vm568, %v576, 0.0
  %v601 = vsel %vm561, %v577, 0.0
  %v602 = vsel %vm562, %v578, 0.0
  %v603 = vsel %vm563, %v579, 0.0
  %v604 = vsel %vm564, %v580, 0.0
  %v605 = vsel %vm565, %v581, 0.0
  %v606 = vsel %vm566, %v582, 0.0
  %v607 = vsel %vm567, %v583, 0.0
  %v608 = vsel %vm568, %v584, 0.0
  %v609 = vsel %vm561, %v585, 0.0
  %v610 = vsel %vm562, %v586, 0.0
  %v611 = vsel %vm563, %v587, 0.0
  %v612 = vsel %vm564, %v588, 0.0
  %v613 = vsel %vm565, %v589, 0.0
  %v614 = vsel %vm566, %v590, 0.0
  %v615 = vsel %vm567, %v591, 0.0
  %v616 = vsel %vm568, %v592, 0.0
  %v617 = vadd.f32 %v593, %v594
  %v618 = vadd.f32 %v617, %v595
  %v619 = vadd.f32 %v618, %v596
  %v620 = vadd.f32 %v619, %v597
  %v621 = vadd.f32 %v620, %v598
  %v622 = vadd.f32 %v621, %v599
  %v623 = vadd.f32 %v622, %v600
  %v624 = vrot.slane %v623, 4
  %v625 = vadd.f32 %v623, %v624
  %v626 = vrot.slane %v625, 2
  %v627 = vadd.f32 %v625, %v626
  %v628 = vrot.slane %v627, 1
  %v629 = vadd.f32 %v627, %v628
  %v630 = vadd.f32 %v601, %v602
  %v631 = vadd.f32 %v630, %v603
  %v632 = vadd.f32 %v631, %v604
  %v633 = vadd.f32 %v632, %v605
  %v634 = vadd.f32 %v633, %v606
  %v635 = vadd.f32 %v634, %v607
  %v636 = vadd.f32 %v635, %v608
  %v637 = vrot.slane %v636, 4
  %v638 = vadd.f32 %v636, %v637
  %v639 = vrot.slane %v638, 2
  %v640 = vadd.f32 %v638, %v639
  %v641 = vrot.slane %v640, 1
  %v642 = vadd.f32 %v640, %v641
  %v643 = vadd.f32 %v609, %v610
  %v644 = vadd.f32 %v643, %v611
  %v645 = vadd.f32 %v644, %v612
  %v646 = vadd.f32 %v645, %v613
  %v647 = vadd.f32 %v646, %v614
  %v648 = vadd.f32 %v647, %v615
  %v649 = vadd.f32 %v648, %v616
  %v650 = vrot.slane %v649, 4
  %v651 = vadd.f32 %v649, %v650
  %v652 = vrot.slane %v651, 2
  %v653 = vadd.f32 %v651, %v652
  %v654 = vrot.slane %v653, 1
  %v655 = vadd.f32 %v653, %v654
  %vm659 = vcmask 1041409
  %v660 = vsel %vm659, %v642, %v629
  %vm661 = vcmask 1042434
  %v662 = vsel %vm661, %v655, %v660
  %vm664 = vcmask 2048
  %665 = vst.msk [vmem:[%s2] sm:$0x7] %vm664, %v662
  // Predicated region
  $region10: #{tpu_custom_call.1} parent=0 // pred_check
    _
  $region11: #{tpu_custom_call.1} parent=0 // pred_check_branch
    %667 = sbr.rel (0) target = $region13
  $region12: #{tpu_custom_call.1} parent=0 // pred_region
    _
  $region13: #{tpu_custom_call.1} parent=0 // pred_fallthru
    _
  // Predicated region
  $region14: #{tpu_custom_call.1} parent=0 // pred_check
    _
  $region15: #{tpu_custom_call.1} parent=0 // pred_check_branch
    %669 = sbr.rel (0) target = $region17
  $region16: #{tpu_custom_call.1} parent=0 // pred_region
    _
  $region17: #{tpu_custom_call.1} parent=0 // pred_fallthru
    _

</llo_original>
